<compile_context>
chip_gen: v7x
topology: tpu7x:2x2x1
jax: 0.10.0
libtpu: 0.0.40
codegen_flags: <defaults>
</compile_context>

<pallas_src>
import functools

import jax
import jax.numpy as jnp
from jax import lax
from jax.experimental import pallas as pl
from jax.experimental.pallas import tpu as pltpu


def _round_up(v: int, m: int) -> int:
    return (v + m - 1) // m * m


def _gcn_linear_kernel(x_ref, w_ref, b_ref, o_ref):
    # x_ref: [TM, in_dim], w_ref: [out_p, in_dim] (PyTorch layout, resident),
    # b_ref: [1, out_p], o_ref: [TM, out_p].
    # Contract over in_dim on the MXU, accumulate in f32, bias add in f32.
    acc = lax.dot_general(
        x_ref[...],
        w_ref[...],
        dimension_numbers=(((1,), (1,)), ((), ())),
        preferred_element_type=jnp.float32,
    )
    o_ref[...] = (acc + b_ref[...]).astype(o_ref.dtype)


def prepare_gcn_params(weight, bias, compute_dtype=None):
    """One-time parameter preparation (do this at load time, not per call).

    weight: [out_dim, in_dim]  (nn.Linear convention)
    bias:   [out_dim]
    Returns (w_prepared [out_p, in_dim], b_prepared [1, out_p] f32, out_dim)
    with out_p = out_dim rounded up to a multiple of 128 (lane-dense output).
    """
    out_dim, in_dim = weight.shape
    out_p = _round_up(out_dim, 128)
    w = weight
    b = bias
    if out_p != out_dim:
        w = jnp.pad(w, ((0, out_p - out_dim), (0, 0)))
        b = jnp.pad(b, ((0, out_p - out_dim),))
    if compute_dtype is not None:
        w = w.astype(compute_dtype)
    b = b.reshape(1, out_p).astype(jnp.float32)
    return w, b, out_dim


@functools.partial(jax.jit, static_argnames=("out_dim", "compute_dtype", "tile_rows"))
def gcn_layer_forward(x, w_prepared, b_prepared, *, out_dim,
                      compute_dtype=None, tile_rows=512):
    """Pallas equivalent of GCNLayer.forward (edge_index is unused upstream).

    x:          [N, in_dim]
    w_prepared: [out_p, in_dim]  from prepare_gcn_params
    b_prepared: [1, out_p]       from prepare_gcn_params
    Returns [N, out_dim] in x.dtype.
    """
    n, in_dim = x.shape
    out_p = w_prepared.shape[0]
    out_dtype = x.dtype

    if compute_dtype is not None:
        x = x.astype(compute_dtype)

    # Row tile: multiple of 8 (f32 sublane), capped at `tile_rows`; pad N so
    # the grid tiles exactly (padded rows produce `bias` and are sliced off).
    tm = min(int(tile_rows), _round_up(n, 8))
    n_pad = _round_up(n, tm)
    if n_pad != n:
        x = jnp.pad(x, ((0, n_pad - n), (0, 0)))

    grid = (n_pad // tm,)

    x_bytes = jnp.dtype(x.dtype).itemsize
    w_bytes = jnp.dtype(w_prepared.dtype).itemsize
    o_bytes = jnp.dtype(out_dtype).itemsize

    # 2 buffers per pipelined operand + resident weight/bias + headroom.
    vmem_bytes = (
        2 * tm * in_dim * x_bytes      # x tiles (double-buffered)
        + 2 * tm * out_p * o_bytes     # out tiles (double-buffered)
        + 2 * out_p * in_dim * w_bytes # resident weight
        + 2 * out_p * 4                # resident bias
        + (4 << 20)                    # headroom
    )
    vmem_bytes = int(min(vmem_bytes, 100 << 20))

    cost = pl.CostEstimate(
        flops=2 * n_pad * in_dim * out_p,
        transcendentals=0,
        bytes_accessed=(
            n_pad * in_dim * x_bytes
            + out_p * in_dim * w_bytes
            + out_p * 4
            + n_pad * out_p * o_bytes
        ),
    )

    out = pl.pallas_call(
        _gcn_linear_kernel,
        out_shape=jax.ShapeDtypeStruct((n_pad, out_p), out_dtype),
        grid_spec=pltpu.PrefetchScalarGridSpec(
            num_scalar_prefetch=0,
            grid=grid,
            in_specs=[
                pl.BlockSpec((tm, in_dim), lambda i: (i, 0)),      # x: tiled rows
                pl.BlockSpec((out_p, in_dim), lambda i: (0, 0)),   # W: resident
                pl.BlockSpec((1, out_p), lambda i: (0, 0)),        # b: resident
            ],
            out_specs=pl.BlockSpec((tm, out_p), lambda i: (i, 0)),
        ),
        compiler_params=pltpu.CompilerParams(
            dimension_semantics=("parallel",),   # row tiles are independent
            vmem_limit_bytes=vmem_bytes,
        ),
        cost_estimate=cost,
    )(x, w_prepared, b_prepared)

    return out[:n, :out_dim]


if __name__ == "__main__":
    # Small shapes consistent with a GCN layer: 8 nodes, in_dim=32, out_dim=16.
    num_nodes, in_dim, out_dim = 8, 32, 16

    key = jax.random.PRNGKey(0)
    kx, kw, kb, kx2 = jax.random.split(key, 4)

    x = jax.random.normal(kx, (num_nodes, in_dim), dtype=jnp.float32)
    weight = jax.random.normal(kw, (out_dim, in_dim), dtype=jnp.float32) * 0.1
    bias = jax.random.normal(kb, (out_dim,), dtype=jnp.float32) * 0.1

    # --- f32 path (strict accuracy check) ---------------------------------
    w_p, b_p, od = prepare_gcn_params(weight, bias)
    out = gcn_layer_forward(x, w_p, b_p, out_dim=od)
    out = jax.block_until_ready(out)
    ref = x @ weight.T + bias
    assert out.shape == (num_nodes, out_dim)
    assert jnp.allclose(out, ref, atol=1e-5, rtol=1e-5)

    # --- bigger node count: exercises row tiling (grid > 1) + padding ------
    n_big = 1000
    x_big = jax.random.normal(kx2, (n_big, in_dim), dtype=jnp.float32)
    out_big = gcn_layer_forward(x_big, w_p, b_p, out_dim=od)
    out_big = jax.block_until_ready(out_big)
    ref_big = x_big @ weight.T + bias
    assert out_big.shape == (n_big, out_dim)
    assert jnp.allclose(out_big, ref_big, atol=1e-4, rtol=1e-4)

    # --- bf16 compute path (v6e/v7x memory-bandwidth optimization) ---------
    w_bf, b_bf, od_bf = prepare_gcn_params(weight, bias, compute_dtype=jnp.bfloat16)
    out_bf = gcn_layer_forward(x_big, w_bf, b_bf, out_dim=od_bf,
                               compute_dtype=jnp.bfloat16)
    out_bf = jax.block_until_ready(out_bf)
    assert out_bf.shape == (n_big, out_dim)
    assert jnp.allclose(out_bf, ref_big, atol=2e-2, rtol=2e-2)

    print("KERNEL_OK")
</pallas_src>

<mosaic_0001>
module attributes {stable_mosaic.version = 11 : i64} {
  func.func @_gcn_linear_kernel(%arg0: i32, %arg1: memref<8x32xf32, #tpu.memory_space<vmem>>, %arg2: memref<128x32xf32, #tpu.memory_space<vmem>>, %arg3: memref<1x128xf32, #tpu.memory_space<vmem>>, %arg4: memref<8x128xf32, #tpu.memory_space<vmem>>) attributes {dimension_semantics = [#tpu.dimension_semantics<parallel>], iteration_bounds = array<i64: 1>, scalar_prefetch = 0 : i64, scratch_operands = 0 : i64, tpu.core_type = #tpu.core_type<tc>, window_params = [{transform_indices = @transform_0, window_bounds = array<i64: 8, 32>}, {pipeline_mode = #tpu.pipeline_mode<synchronous>, transform_indices = @transform_1, window_bounds = array<i64: 128, 32>}, {pipeline_mode = #tpu.pipeline_mode<synchronous>, transform_indices = @transform_2, window_bounds = array<i64: 1, 128>}, {transform_indices = @transform_3, window_bounds = array<i64: 8, 128>}]} {
    %c0 = arith.constant 0 : index
    %c0_0 = arith.constant 0 : index
    %0 = vector.load %arg1[%c0, %c0_0] : memref<8x32xf32, #tpu.memory_space<vmem>>, vector<8x32xf32>
    %c0_1 = arith.constant 0 : index
    %c0_2 = arith.constant 0 : index
    %1 = vector.load %arg2[%c0_1, %c0_2] : memref<128x32xf32, #tpu.memory_space<vmem>>, vector<128x32xf32>
    %cst = arith.constant dense<0.000000e+00> : vector<8x128xf32>
    %2 = tpu.matmul %0, %1, %cst {dimension_numbers = #tpu.dot_dimension_numbers<[1], [1], [0], [0], [0, 0, 1, 0], [], []>} : vector<8x32xf32>, vector<128x32xf32>, vector<8x128xf32> -> vector<8x128xf32>
    %c0_3 = arith.constant 0 : index
    %c0_4 = arith.constant 0 : index
    %3 = vector.load %arg3[%c0_3, %c0_4] : memref<1x128xf32, #tpu.memory_space<vmem>>, vector<1x128xf32>
    %4 = vector.broadcast %3 : vector<1x128xf32> to vector<8x128xf32>
    %5 = arith.addf %2, %4 : vector<8x128xf32>
    %c0_5 = arith.constant 0 : index
    %c0_6 = arith.constant 0 : index
    %6 = vector.load %arg4[%c0_5, %c0_6] : memref<8x128xf32, #tpu.memory_space<vmem>>, vector<8x128xf32>
    tpu.vector_store %arg4[%c0_5, %c0_6], %5 {strides = array<i32>} : memref<8x128xf32, #tpu.memory_space<vmem>>, vector<8x128xf32>,
    return
  }
  func.func @transform_0(%arg0: i32) -> (i32, i32) {
    %c0_i32 = arith.constant 0 : i32
    %c0_i32_0 = arith.constant 0 : i32
    return %arg0, %c0_i32 : i32, i32
  }
  func.func @transform_1(%arg0: i32) -> (i32, i32) {
    %c0_i32 = arith.constant 0 : i32
    %c0_i32_0 = arith.constant 0 : i32
    %c0_i32_1 = arith.constant 0 : i32
    return %c0_i32, %c0_i32_0 : i32, i32
  }
  func.func @transform_2(%arg0: i32) -> (i32, i32) {
    %c0_i32 = arith.constant 0 : i32
    %c0_i32_0 = arith.constant 0 : i32
    %c0_i32_1 = arith.constant 0 : i32
    return %c0_i32, %c0_i32_0 : i32, i32
  }
  func.func @transform_3(%arg0: i32) -> (i32, i32) {
    %c0_i32 = arith.constant 0 : i32
    %c0_i32_0 = arith.constant 0 : i32
    return %arg0, %c0_i32 : i32, i32
  }
}

</mosaic_0001>

<llo_original>
// kernel: gcn_layer_forward.1
$region0: #{gcn_layer_forward.1}
  #allocation0 [shape = 'u32[]', space=smem, size = 0x4, offset = 0x4, fixed_abs, tag = 'smem constant byte address 0x4 - core index']
  #allocation1 [shape = 'u32[144,128]{1,0:T(1,128)}', space=vmem, size = 0x12000, scoped, tag = 'internal scratch']
  %s0 = inlined_call_operand.vmem [shape: f32[8,32], index: 0, kind: input, shape index: {}]
  %s1 = inlined_call_operand.vmem [shape: f32[128,32], index: 1, kind: input, shape index: {}]
  %s2 = inlined_call_operand.vmem [shape: f32[1,128], index: 2, kind: input, shape index: {}]
  %s3 = inlined_call_operand.hbm [shape: f32[8,128], index: 3, kind: output, shape index: {}]
  %s4 = sld [smem:[#allocation0]]
  $region22: #{gcn_layer_forward.1} parent=0
    _
  %s6 = ssub.s32 1, %s4
  %s7 = scalar_select 0, %s6, %s4
  $region1: #{gcn_layer_forward.1} parent=0
    #allocation2 [shape = 'u8[4096]{0}', space=vmem, size = 0x1000, scoped, tag = 'output window, operand 0, single buffered']
    #allocation3 [shape = 's32[1]{0}', space=sflag, size = 0x4, scoped, tag = 'scoped memory for gcn_layer_forward.1']
    %8 = vsyncpa [#allocation3], 0
    // Predicated region
    $region2: #{gcn_layer_forward.1} parent=1 // pred_check
      _
    $region3: #{gcn_layer_forward.1} parent=1 // pred_check_branch
      %10 = sbr.rel (0) target = $region5
    $region4: #{gcn_layer_forward.1} parent=1 // pred_region
      _
    $region5: #{gcn_layer_forward.1} parent=1 // pred_fallthru
      _
    // Predicated region
    $region6: #{gcn_layer_forward.1} parent=1 // pred_check
      _
    $region7: #{gcn_layer_forward.1} parent=1 // pred_check_branch
      %12 = sbr.rel (0) target = $region9
    $region8: #{gcn_layer_forward.1} parent=1 // pred_region
      _
    $region9: #{gcn_layer_forward.1} parent=1 // pred_fallthru
      _
    // Predicated region
    $region10: #{gcn_layer_forward.1} parent=1 // pred_check
      _
    $region11: #{gcn_layer_forward.1} parent=1 // pred_check_branch
      %14 = sbr.rel (0) target = $region13
    $region12: #{gcn_layer_forward.1} parent=1 // pred_region
      _
    $region13: #{gcn_layer_forward.1} parent=1 // pred_fallthru
      _
    %v15 = vld [vmem:[%s0] sm:$0xff]
    %v16 = vld [vmem:[%s1] sm:$0xff]
    %v17 = vld [vmem:[%s1 + $0x8] sm:$0xff]
    %v18 = vld [vmem:[%s1 + $0x10] sm:$0xff]
    %v19 = vld [vmem:[%s1 + $0x18] sm:$0xff]
    %v20 = vld [vmem:[%s1 + $0x20] sm:$0xff]
    %v21 = vld [vmem:[%s1 + $0x28] sm:$0xff]
    %v22 = vld [vmem:[%s1 + $0x30] sm:$0xff]
    %v23 = vld [vmem:[%s1 + $0x38] sm:$0xff]
    %v24 = vld [vmem:[%s1 + $0x40] sm:$0xff]
    %v25 = vld [vmem:[%s1 + $0x48] sm:$0xff]
    %v26 = vld [vmem:[%s1 + $0x50] sm:$0xff]
    %v27 = vld [vmem:[%s1 + $0x58] sm:$0xff]
    %v28 = vld [vmem:[%s1 + $0x60] sm:$0xff]
    %v29 = vld [vmem:[%s1 + $0x68] sm:$0xff]
    %v30 = vld [vmem:[%s1 + $0x70] sm:$0xff]
    %v31 = vld [vmem:[%s1 + $0x78] sm:$0xff]
    %v32 = vld [vmem:[%s2] sm:$0x1]
    %v34 = vlaneseq
    %v35 = vshrl.u32 %v34, 7
    %v36 = vsub.s32 0, %v35
    %v37 = vrot.slane %v32, %v36
    %vm39 = vcmask 261120
    %v41 = vsel %vm39, %v15, 0
    %v44 = vsel %vm39, %v16, 0
    %v47 = vsel %vm39, %v17, 0
    %v50 = vsel %vm39, %v18, 0
    %v53 = vsel %vm39, %v19, 0
    %v56 = vsel %vm39, %v20, 0
    %v59 = vsel %vm39, %v21, 0
    %v62 = vsel %vm39, %v22, 0
    %v65 = vsel %vm39, %v23, 0
    %v68 = vsel %vm39, %v24, 0
    %v71 = vsel %vm39, %v25, 0
    %v74 = vsel %vm39, %v26, 0
    %v77 = vsel %vm39, %v27, 0
    %v80 = vsel %vm39, %v28, 0
    %v83 = vsel %vm39, %v29, 0
    %v86 = vsel %vm39, %v30, 0
    %v89 = vsel %vm39, %v31, 0
    %91 = vmatprep.subr.mxu0 0.0
    %92 = vmatpush1.xpose.msra.mxu0 %v44
    %93 = vmatprep.subr.mxu0 0.0
    %94 = vmatpush1.xpose.msra.mxu0 %v47
    %95 = vmatprep.subr.mxu0 0.0
    %96 = vmatpush1.xpose.msra.mxu0 %v50
    %97 = vmatprep.subr.mxu0 0.0
    %98 = vmatpush1.xpose.msra.mxu0 %v53
    %99 = vmatprep.subr.mxu0 0.0
    %100 = vmatpush1.xpose.msra.mxu0 %v56
    %101 = vmatprep.subr.mxu0 0.0
    %102 = vmatpush1.xpose.msra.mxu0 %v59
    %103 = vmatprep.subr.mxu0 0.0
    %104 = vmatpush1.xpose.msra.mxu0 %v62
    %105 = vmatprep.subr.mxu0 0.0
    %106 = vmatpush1.xpose.msra.mxu0 %v65
    %107 = vmatprep.subr.mxu0 0.0
    %108 = vmatpush1.xpose.msra.mxu0 %v68
    %109 = vmatprep.subr.mxu0 0.0
    %110 = vmatpush1.xpose.msra.mxu0 %v71
    %111 = vmatprep.subr.mxu0 0.0
    %112 = vmatpush1.xpose.msra.mxu0 %v74
    %113 = vmatprep.subr.mxu0 0.0
    %114 = vmatpush1.xpose.msra.mxu0 %v77
    %115 = vmatprep.subr.mxu0 0.0
    %116 = vmatpush1.xpose.msra.mxu0 %v80
    %117 = vmatprep.subr.mxu0 0.0
    %118 = vmatpush1.xpose.msra.mxu0 %v83
    %119 = vmatprep.subr.mxu0 0.0
    %120 = vmatpush1.xpose.msra.mxu0 %v86
    %121 = vmatprep.subr.mxu0 0.0
    %122 = vmatpush1.xpose.msra.mxu0 %v89
    %123 = vmatprep.subr.mxu0 0.0
    %124 = vmatpush1.xpose.msra.mxu0 0.0
    %125 = vmatprep.subr.mxu0 0.0
    %126 = vmatpush1.xpose.msra.mxu0 0.0
    %127 = vmatprep.subr.mxu0 0.0
    %128 = vmatpush1.xpose.msra.mxu0 0.0
    %129 = vmatprep.subr.mxu0 0.0
    %130 = vmatpush1.xpose.msra.mxu0 0.0
    %131 = vmatprep.subr.mxu0 0.0
    %132 = vmatpush1.xpose.msra.mxu0 0.0
    %133 = vmatprep.subr.mxu0 0.0
    %134 = vmatpush1.xpose.msra.mxu0 0.0
    %135 = vmatprep.subr.mxu0 0.0
    %136 = vmatpush1.xpose.msra.mxu0 0.0
    %137 = vmatprep.subr.mxu0 0.0
    %138 = vmatpush1.xpose.msra.mxu0 0.0
    %139 = vmatprep.subr.mxu0 0.0
    %140 = vmatpush1.xpose.msra.mxu0 0.0
    %141 = vmatprep.subr.mxu0 0.0
    %142 = vmatpush1.xpose.msra.mxu0 0.0
    %143 = vmatprep.subr.mxu0 0.0
    %144 = vmatpush1.xpose.msra.mxu0 0.0
    %145 = vmatprep.subr.mxu0 0.0
    %146 = vmatpush1.xpose.msra.mxu0 0.0
    %147 = vmatprep.subr.mxu0 0.0
    %148 = vmatpush1.xpose.msra.mxu0 0.0
    %149 = vmatprep.subr.mxu0 0.0
    %150 = vmatpush1.xpose.msra.mxu0 0.0
    %151 = vmatprep.subr.mxu0 0.0
    %152 = vmatpush1.xpose.msra.mxu0 0.0
    %153 = vmatprep.subr.mxu0 0.0
    %154 = vmatpush1.xpose.msra.mxu0 0.0
    %155 = vmatprep.mubr.f32.mxu0 0.0
    %156 = vmatmul.mubr.f32.gmra.mrb[0].mxu0 %v41
    %v157 = vpop.f32.mrb[0].mxu0
    %v158 = vadd.f32 %v37, %v157
    %v159 = vpop.f32.mrb[0].mxu0
    %160 = vdwg.mxu0
    %161 = vst [vmem:[#allocation2] sm:$0xff] %v158
    // Predicated region
    $region14: #{gcn_layer_forward.1} parent=1 // pred_check
      _
    $region15: #{gcn_layer_forward.1} parent=1 // pred_check_branch
      %163 = sbr.rel (0) target = $region17
    $region16: #{gcn_layer_forward.1} parent=1 // pred_region
      %s165 = ssub.s32 128, 128
      %166 = vsyncadd [#allocation3], %s165
      %s168 = sshll.u32 [#allocation2], 4
      %s169 = int_to_ptr.vmem [resolvable:$true] %s168
      %171 = dma.vmem_to_hbm [thread:$0]  %s169, 128, %s3, [#allocation3]
    $region17: #{gcn_layer_forward.1} parent=1 // pred_fallthru
      _
    // Predicated region
    $region18: #{gcn_layer_forward.1} parent=1 // pred_check
      _
    $region19: #{gcn_layer_forward.1} parent=1 // pred_check_branch
      %173 = sbr.rel (0) target = $region21
    $region20: #{gcn_layer_forward.1} parent=1 // pred_region
      %174 = dma.done [#allocation3], 128
    $region21: #{gcn_layer_forward.1} parent=1 // pred_fallthru
      _
    %175 = vsyncpa [#allocation3], 1

</llo_original>
